<compile_context>
chip_gen: v5e
topology: v5e:2x2
jax: 0.10.0
libtpu: 0.0.40
codegen_flags: <defaults>
</compile_context>

<pallas_src>
import functools

import jax
import jax.numpy as jnp
from jax.experimental import pallas as pl
from jax.experimental.pallas import tpu as pltpu

_LANES = 128
_TARGET_TILE_ROWS = 1024   # (1024, 128) f32 tile = 512 KiB per pipeline buffer


def _round_up(x, m):
    return ((x + m - 1) // m) * m


def _wbce_kernel(out_ref, tgt_ref, res_ref,
                 acc_bce, acc_tbce, acc_t,
                 *, n_elems, tile_rows):
    """One grid step of the streaming weighted-BCE reduction.

    out_ref, tgt_ref : (tile_rows, 128) VMEM tiles of logits / targets
    res_ref          : (1,) SMEM output, final weighted BCE scalar
    acc_*            : (tile_rows, 128) f32 VMEM accumulators (VPU-only adds)
    """
    step = pl.program_id(0)

    @pl.when(step == 0)
    def _():
        acc_bce[...] = jnp.zeros_like(acc_bce)
        acc_tbce[...] = jnp.zeros_like(acc_tbce)
        acc_t[...] = jnp.zeros_like(acc_t)

    x = out_ref[...].astype(jnp.float32)
    t = tgt_ref[...].astype(jnp.float32)

    # Mask padded tail elements (global flat index >= n_elems).
    row = jax.lax.broadcasted_iota(jnp.int32, (tile_rows, _LANES), 0)
    lane = jax.lax.broadcasted_iota(jnp.int32, (tile_rows, _LANES), 1)
    flat_idx = (step * tile_rows + row) * _LANES + lane
    valid = flat_idx < n_elems

    # Numerically stable BCE-with-logits (matches torch.nn.BCEWithLogitsLoss):
    #   loss = max(x, 0) - x*t + log(1 + exp(-|x|))
    bce = jnp.maximum(x, 0.0) - x * t + jnp.log1p(jnp.exp(-jnp.abs(x)))
    bce = jnp.where(valid, bce, 0.0)
    t = jnp.where(valid, t, 0.0)

    # Tile-shaped partial sums: keeps the hot loop on the VPU; the cross-lane
    # reduce happens exactly once in the final step.
    acc_bce[...] += bce
    acc_tbce[...] += t * bce
    acc_t[...] += t

    @pl.when(step == pl.num_programs(0) - 1)
    def _():
        n = jnp.float32(n_elems)
        sum_bce = jnp.sum(acc_bce[...])
        sum_tbce = jnp.sum(acc_tbce[...])
        sum_t = jnp.sum(acc_t[...])
        unweighted = sum_bce / n
        disease = sum_tbce / n
        # Matches PyTorch: sum(1 - t) / sum(t).  (Same div-by-zero hazard as
        # the reference module when the target has no positives.)
        ratio = (n - sum_t) / sum_t
        res_ref[0] = unweighted + (ratio - 1.0) * disease


def weighted_bce_loss(inp, output, target):
    """Pallas equivalent of WeightedBCELoss.forward(input, output, target).

    `inp` is accepted for signature parity with the PyTorch module but unused
    (the PyTorch forward ignores it too).
    """
    del inp  # unused, as in the reference module
    total = int(output.size)
    rows = -(-total // _LANES)

    # Row (sublane) alignment required by the narrowest input dtype:
    # f32 -> 8, bf16 -> 16, int8/bool -> 32.
    min_itemsize = min(jnp.dtype(output.dtype).itemsize,
                       jnp.dtype(target.dtype).itemsize)
    row_align = 8 * max(1, 4 // min_itemsize)

    tile_rows = min(_TARGET_TILE_ROWS, _round_up(rows, row_align))
    rows_padded = _round_up(rows, tile_rows)
    grid = (rows_padded // tile_rows,)

    pad = rows_padded * _LANES - total

    def _prep(a):
        flat = a.reshape(-1)
        if pad:
            flat = jnp.pad(flat, (0, pad))
        return flat.reshape(rows_padded, _LANES)

    # Native dtype in HBM; cast to f32 inside the kernel (no wrapper cast).
    out2d = _prep(output)
    tgt2d = _prep(target)

    kernel = functools.partial(_wbce_kernel, n_elems=total, tile_rows=tile_rows)

    # TODO(synk): on v7x (2 TensorCores) split the reduction across cores via a
    # leading "parallel" grid axis with per-core partial sums combined in the
    # wrapper; the carried accumulators require the current axis to stay
    # "arbitrary" (sequential).
    res = pl.pallas_call(
        kernel,
        out_shape=jax.ShapeDtypeStruct((1,), jnp.float32),
        grid_spec=pltpu.PrefetchScalarGridSpec(
            num_scalar_prefetch=0,
            grid=grid,
            in_specs=[
                pl.BlockSpec((tile_rows, _LANES), lambda i: (i, 0)),
                pl.BlockSpec((tile_rows, _LANES), lambda i: (i, 0)),
            ],
            out_specs=pl.BlockSpec(memory_space=pltpu.SMEM),
            scratch_shapes=[
                pltpu.VMEM((tile_rows, _LANES), jnp.float32),
                pltpu.VMEM((tile_rows, _LANES), jnp.float32),
                pltpu.VMEM((tile_rows, _LANES), jnp.float32),
            ],
        ),
        compiler_params=pltpu.CompilerParams(
            dimension_semantics=("arbitrary",)),
    )(out2d, tgt2d)
    return res[0]


def _reference(output, target):
    x = output.astype(jnp.float32)
    t = target.astype(jnp.float32)
    bce = jnp.maximum(x, 0.0) - x * t + jnp.log1p(jnp.exp(-jnp.abs(x)))
    unweighted = jnp.mean(bce)
    disease = jnp.mean(t * bce)
    ratio = jnp.sum(1.0 - t) / jnp.sum(t)
    return unweighted + (ratio - 1.0) * disease


if __name__ == "__main__":
    key = jax.random.PRNGKey(0)
    k1, k2, k3 = jax.random.split(key, 3)
    shape = (2, 4, 16, 16)  # NCHW, like the PyTorch module's conv-style inputs
    inp = jax.random.normal(k1, shape, dtype=jnp.float32)      # unused by loss
    logits = jax.random.normal(k2, shape, dtype=jnp.float32)   # "output"
    target = jax.random.bernoulli(k3, p=0.3, shape=shape).astype(jnp.float32)

    loss = weighted_bce_loss(inp, logits, target)
    loss = jax.block_until_ready(loss)

    ref = _reference(logits, target)
    assert jnp.allclose(loss, ref, rtol=1e-5, atol=1e-5), (loss, ref)
    print("KERNEL_OK")
</pallas_src>

<mosaic_0001>
module attributes {stable_mosaic.version = 11 : i64} {
  func.func @_wbce_kernel(%arg0: i32, %arg1: memref<16x128xf32, #tpu.memory_space<vmem>>, %arg2: memref<16x128xf32, #tpu.memory_space<vmem>>, %arg3: memref<1xf32, #tpu.memory_space<smem>>, %arg4: memref<16x128xf32, #tpu.memory_space<vmem>>, %arg5: memref<16x128xf32, #tpu.memory_space<vmem>>, %arg6: memref<16x128xf32, #tpu.memory_space<vmem>>) attributes {dimension_semantics = [#tpu.dimension_semantics<arbitrary>], iteration_bounds = array<i64: 1>, scalar_prefetch = 0 : i64, scratch_operands = 3 : i64, tpu.core_type = #tpu.core_type<tc>, window_params = [{transform_indices = @transform_0, window_bounds = array<i64: 16, 128>}, {transform_indices = @transform_1, window_bounds = array<i64: 16, 128>}, {transform_indices = @transform_2, window_bounds = array<i64: 1>}]} {
    %c0_i32 = arith.constant 0 : i32
    %0 = arith.cmpi eq, %arg0, %c0_i32 : i32
    %1 = arith.extui %0 : i1 to i32
    %c0_i32_0 = arith.constant 0 : i32
    %2 = arith.cmpi ne, %1, %c0_i32_0 : i32
    scf.if %2 {
      %cst_21 = arith.constant 0.000000e+00 : f32
      %42 = vector.broadcast %cst_21 : f32 to vector<16x128xf32>
      %c0_22 = arith.constant 0 : index
      %c0_23 = arith.constant 0 : index
      %43 = vector.load %arg4[%c0_22, %c0_23] : memref<16x128xf32, #tpu.memory_space<vmem>>, vector<16x128xf32>
      tpu.vector_store %arg4[%c0_22, %c0_23], %42 {strides = array<i32>} : memref<16x128xf32, #tpu.memory_space<vmem>>, vector<16x128xf32>,
      %cst_24 = arith.constant 0.000000e+00 : f32
      %44 = vector.broadcast %cst_24 : f32 to vector<16x128xf32>
      %c0_25 = arith.constant 0 : index
      %c0_26 = arith.constant 0 : index
      %45 = vector.load %arg5[%c0_25, %c0_26] : memref<16x128xf32, #tpu.memory_space<vmem>>, vector<16x128xf32>
      tpu.vector_store %arg5[%c0_25, %c0_26], %44 {strides = array<i32>} : memref<16x128xf32, #tpu.memory_space<vmem>>, vector<16x128xf32>,
      %cst_27 = arith.constant 0.000000e+00 : f32
      %46 = vector.broadcast %cst_27 : f32 to vector<16x128xf32>
      %c0_28 = arith.constant 0 : index
      %c0_29 = arith.constant 0 : index
      %47 = vector.load %arg6[%c0_28, %c0_29] : memref<16x128xf32, #tpu.memory_space<vmem>>, vector<16x128xf32>
      tpu.vector_store %arg6[%c0_28, %c0_29], %46 {strides = array<i32>} : memref<16x128xf32, #tpu.memory_space<vmem>>, vector<16x128xf32>,
    } else {
    }
    %c0 = arith.constant 0 : index
    %c0_1 = arith.constant 0 : index
    %3 = vector.load %arg1[%c0, %c0_1] : memref<16x128xf32, #tpu.memory_space<vmem>>, vector<16x128xf32>
    %c0_2 = arith.constant 0 : index
    %c0_3 = arith.constant 0 : index
    %4 = vector.load %arg2[%c0_2, %c0_3] : memref<16x128xf32, #tpu.memory_space<vmem>>, vector<16x128xf32>
    %5 = tpu.iota {dimensions = array<i32: 0>} : vector<16x128xi32>
    %6 = tpu.iota {dimensions = array<i32: 1>} : vector<16x128xi32>
    %c16_i32 = arith.constant 16 : i32
    %7 = arith.muli %arg0, %c16_i32 : i32
    %8 = vector.broadcast %7 : i32 to vector<16x128xi32>
    %9 = arith.addi %8, %5 : vector<16x128xi32>
    %c128_i32 = arith.constant 128 : i32
    %10 = vector.broadcast %c128_i32 : i32 to vector<16x128xi32>
    %11 = arith.muli %9, %10 : vector<16x128xi32>
    %12 = arith.addi %11, %6 : vector<16x128xi32>
    %c2048_i32 = arith.constant 2048 : i32
    %13 = vector.broadcast %c2048_i32 : i32 to vector<16x128xi32>
    %14 = arith.cmpi slt, %12, %13 : vector<16x128xi32>
    %cst = arith.constant 0.000000e+00 : f32
    %15 = vector.broadcast %cst : f32 to vector<16x128xf32>
    %16 = arith.maximumf %3, %15 : vector<16x128xf32>
    %17 = arith.mulf %3, %4 : vector<16x128xf32>
    %18 = arith.subf %16, %17 : vector<16x128xf32>
    %19 = math.absf %3 : vector<16x128xf32>
    %cst_4 = arith.constant 0.000000e+00 : f32
    %20 = vector.broadcast %cst_4 : f32 to vector<16x128xf32>
    %21 = arith.subf %20, %19 : vector<16x128xf32>
    %22 = math.exp %21 : vector<16x128xf32>
    %23 = math.log1p %22 : vector<16x128xf32>
    %24 = arith.addf %18, %23 : vector<16x128xf32>
    %cst_5 = arith.constant 0.000000e+00 : f32
    %25 = vector.broadcast %cst_5 : f32 to vector<16x128xf32>
    %26 = arith.select %14, %24, %25 : vector<16x128xi1>, vector<16x128xf32>
    %cst_6 = arith.constant 0.000000e+00 : f32
    %27 = vector.broadcast %cst_6 : f32 to vector<16x128xf32>
    %28 = arith.select %14, %4, %27 : vector<16x128xi1>, vector<16x128xf32>
    %c0_7 = arith.constant 0 : index
    %c0_8 = arith.constant 0 : index
    %29 = vector.load %arg4[%c0_7, %c0_8] : memref<16x128xf32, #tpu.memory_space<vmem>>, vector<16x128xf32>
    %30 = arith.addf %29, %26 : vector<16x128xf32>
    %c0_9 = arith.constant 0 : index
    %c0_10 = arith.constant 0 : index
    %31 = vector.load %arg4[%c0_9, %c0_10] : memref<16x128xf32, #tpu.memory_space<vmem>>, vector<16x128xf32>
    tpu.vector_store %arg4[%c0_9, %c0_10], %30 {strides = array<i32>} : memref<16x128xf32, #tpu.memory_space<vmem>>, vector<16x128xf32>,
    %c0_11 = arith.constant 0 : index
    %c0_12 = arith.constant 0 : index
    %32 = vector.load %arg5[%c0_11, %c0_12] : memref<16x128xf32, #tpu.memory_space<vmem>>, vector<16x128xf32>
    %33 = arith.mulf %28, %26 : vector<16x128xf32>
    %34 = arith.addf %32, %33 : vector<16x128xf32>
    %c0_13 = arith.constant 0 : index
    %c0_14 = arith.constant 0 : index
    %35 = vector.load %arg5[%c0_13, %c0_14] : memref<16x128xf32, #tpu.memory_space<vmem>>, vector<16x128xf32>
    tpu.vector_store %arg5[%c0_13, %c0_14], %34 {strides = array<i32>} : memref<16x128xf32, #tpu.memory_space<vmem>>, vector<16x128xf32>,
    %c0_15 = arith.constant 0 : index
    %c0_16 = arith.constant 0 : index
    %36 = vector.load %arg6[%c0_15, %c0_16] : memref<16x128xf32, #tpu.memory_space<vmem>>, vector<16x128xf32>
    %37 = arith.addf %36, %28 : vector<16x128xf32>
    %c0_17 = arith.constant 0 : index
    %c0_18 = arith.constant 0 : index
    %38 = vector.load %arg6[%c0_17, %c0_18] : memref<16x128xf32, #tpu.memory_space<vmem>>, vector<16x128xf32>
    tpu.vector_store %arg6[%c0_17, %c0_18], %37 {strides = array<i32>} : memref<16x128xf32, #tpu.memory_space<vmem>>, vector<16x128xf32>,
    %c0_i32_19 = arith.constant 0 : i32
    %39 = arith.cmpi eq, %arg0, %c0_i32_19 : i32
    %40 = arith.extui %39 : i1 to i32
    %c0_i32_20 = arith.constant 0 : i32
    %41 = arith.cmpi ne, %40, %c0_i32_20 : i32
    scf.if %41 {
      %c0_21 = arith.constant 0 : index
      %c0_22 = arith.constant 0 : index
      %42 = vector.load %arg4[%c0_21, %c0_22] : memref<16x128xf32, #tpu.memory_space<vmem>>, vector<16x128xf32>
      %43 = vector.shape_cast %42 : vector<16x128xf32> to vector<1x16x128xf32>
      %cst_23 = arith.constant dense<0.000000e+00> : vector<1xf32>
      %44 = vector.multi_reduction <add>, %43, %cst_23 [1, 2] : vector<1x16x128xf32> to vector<1xf32>
      %45 = vector.shape_cast %44 : vector<1xf32> to vector<1x1x1xf32>
      %46 = vector.extract %45[0, 0, 0] : f32 from vector<1x1x1xf32>
      %c0_24 = arith.constant 0 : index
      %c0_25 = arith.constant 0 : index
      %47 = vector.load %arg5[%c0_24, %c0_25] : memref<16x128xf32, #tpu.memory_space<vmem>>, vector<16x128xf32>
      %48 = vector.shape_cast %47 : vector<16x128xf32> to vector<1x16x128xf32>
      %cst_26 = arith.constant dense<0.000000e+00> : vector<1xf32>
      %49 = vector.multi_reduction <add>, %48, %cst_26 [1, 2] : vector<1x16x128xf32> to vector<1xf32>
      %50 = vector.shape_cast %49 : vector<1xf32> to vector<1x1x1xf32>
      %51 = vector.extract %50[0, 0, 0] : f32 from vector<1x1x1xf32>
      %c0_27 = arith.constant 0 : index
      %c0_28 = arith.constant 0 : index
      %52 = vector.load %arg6[%c0_27, %c0_28] : memref<16x128xf32, #tpu.memory_space<vmem>>, vector<16x128xf32>
      %53 = vector.shape_cast %52 : vector<16x128xf32> to vector<1x16x128xf32>
      %cst_29 = arith.constant dense<0.000000e+00> : vector<1xf32>
      %54 = vector.multi_reduction <add>, %53, %cst_29 [1, 2] : vector<1x16x128xf32> to vector<1xf32>
      %55 = vector.shape_cast %54 : vector<1xf32> to vector<1x1x1xf32>
      %56 = vector.extract %55[0, 0, 0] : f32 from vector<1x1x1xf32>
      %cst_30 = arith.constant 2.048000e+03 : f32
      %57 = arith.divf %46, %cst_30 : f32
      %cst_31 = arith.constant 2.048000e+03 : f32
      %58 = arith.divf %51, %cst_31 : f32
      %cst_32 = arith.constant 2.048000e+03 : f32
      %59 = arith.subf %cst_32, %56 : f32
      %60 = arith.divf %59, %56 : f32
      %cst_33 = arith.constant 1.000000e+00 : f32
      %61 = arith.subf %60, %cst_33 : f32
      %62 = arith.mulf %61, %58 : f32
      %63 = arith.addf %57, %62 : f32
      %c0_34 = arith.constant 0 : index
      %64 = memref.load %arg3[%c0_34] : memref<1xf32, #tpu.memory_space<smem>>
      memref.store %63, %arg3[%c0_34] : memref<1xf32, #tpu.memory_space<smem>>
    } else {
    }
    return
  }
  func.func @transform_0(%arg0: i32) -> (i32, i32) {
    %c0_i32 = arith.constant 0 : i32
    %c0_i32_0 = arith.constant 0 : i32
    return %arg0, %c0_i32 : i32, i32
  }
  func.func @transform_1(%arg0: i32) -> (i32, i32) {
    %c0_i32 = arith.constant 0 : i32
    %c0_i32_0 = arith.constant 0 : i32
    return %arg0, %c0_i32 : i32, i32
  }
  func.func @transform_2(%arg0: i32) -> i32 {
    %c0_i32 = arith.constant 0 : i32
    %c0_i32_0 = arith.constant 0 : i32
    return %c0_i32 : i32
  }
}

</mosaic_0001>

<llo_original>
// kernel: tpu_custom_call.1
$region0: #{tpu_custom_call.1}
  #allocation0 [shape = 'u32[]', space=smem, size = 0x4, offset = 0x4, fixed_abs, tag = 'smem constant byte address 0x4 - core index']
  #allocation1 [shape = 'u32[72,128]{1,0:T(1,128)}', space=vmem, size = 0x9000, scoped, tag = 'internal scratch']
  #allocation2 [shape = 'f32[16,128]{1,0:T(8,128)}', space=vmem, size = 0x2000, scoped, tag = 'scratch operand']
  #allocation3 [shape = 'f32[16,128]{1,0:T(8,128)}', space=vmem, size = 0x2000, scoped, tag = 'scratch operand']
  #allocation4 [shape = 'f32[16,128]{1,0:T(8,128)}', space=vmem, size = 0x2000, scoped, tag = 'scratch operand']
  %s0 = inlined_call_operand.hbm [shape: f32[16,128], index: 0, kind: input, shape index: {}]
  %s1 = inlined_call_operand.hbm [shape: f32[16,128], index: 1, kind: input, shape index: {}]
  %s2 = inlined_call_operand.hbm [shape: f32[1], index: 2, kind: output, shape index: {}]
  %s3 = sld [smem:[#allocation0]]
  $region34: #{tpu_custom_call.1} parent=0
    _
  %s5 = ssub.s32 1, %s3
  %s6 = scalar_select 0, %s5, %s3
  $region1: #{tpu_custom_call.1} parent=0
    #allocation5 [shape = 'u8[8192]{0}', space=vmem, size = 0x2000, scoped, tag = 'input window, operand 0, single buffered']
    #allocation6 [shape = 's32[1]{0}', space=sflag, size = 0x4, scoped, tag = 'scoped memory for tpu_custom_call.1']
    #allocation7 [shape = 's32[1]{0}', space=sflag, size = 0x4, scoped, tag = 'scoped memory for tpu_custom_call.1']
    #allocation8 [shape = 'u8[8192]{0}', space=vmem, size = 0x2000, scoped, tag = 'input window, operand 1, single buffered']
    #allocation9 [shape = 's32[1]{0}', space=sflag, size = 0x4, scoped, tag = 'scoped memory for tpu_custom_call.1']
    #allocation10 [shape = 'u8[512]{0}', space=smem, size = 0x200, scoped, tag = 'output window, operand 0, single buffered']
    %7 = vsyncpa [#allocation6], 0
    %8 = vsyncpa [#allocation9], 0
    %9 = vsyncpa [#allocation7], 0
    // Predicated region
    $region2: #{tpu_custom_call.1} parent=1 // pred_check
      _
    $region3: #{tpu_custom_call.1} parent=1 // pred_check_branch
      %11 = sbr.rel (0) target = $region5
    $region4: #{tpu_custom_call.1} parent=1 // pred_region
      %13 = vsyncadd [#allocation6], 0
      %s14 = sshll.u32 %s0, 4
      %s15 = int_to_ptr.hbm [resolvable:$true] %s14
      %s16 = sshll.u32 [#allocation5], 4
      %s17 = int_to_ptr.vmem [resolvable:$true] %s16
      %22 = dma.hbm_to_vmem [thread:$0]  %s15, 256, %s17, [#allocation6], 128, 128, 8
    $region5: #{tpu_custom_call.1} parent=1 // pred_fallthru
      _
    // Predicated region
    $region6: #{tpu_custom_call.1} parent=1 // pred_check
      _
    $region7: #{tpu_custom_call.1} parent=1 // pred_check_branch
      %24 = sbr.rel (0) target = $region9
    $region8: #{tpu_custom_call.1} parent=1 // pred_region
      %26 = vsyncadd [#allocation9], 0
      %s27 = sshll.u32 %s1, 4
      %s28 = int_to_ptr.hbm [resolvable:$true] %s27
      %s29 = sshll.u32 [#allocation8], 4
      %s30 = int_to_ptr.vmem [resolvable:$true] %s29
      %35 = dma.hbm_to_vmem [thread:$0]  %s28, 256, %s30, [#allocation9], 128, 128, 8
    $region9: #{tpu_custom_call.1} parent=1 // pred_fallthru
      _
    // Predicated region
    $region10: #{tpu_custom_call.1} parent=1 // pred_check
      _
    $region11: #{tpu_custom_call.1} parent=1 // pred_check_branch
      %37 = sbr.rel (0) target = $region13
    $region12: #{tpu_custom_call.1} parent=1 // pred_region
      %39 = dma.done [#allocation6], 256
    $region13: #{tpu_custom_call.1} parent=1 // pred_fallthru
      _
    // Predicated region
    $region14: #{tpu_custom_call.1} parent=1 // pred_check
      _
    $region15: #{tpu_custom_call.1} parent=1 // pred_check_branch
      %41 = sbr.rel (0) target = $region17
    $region16: #{tpu_custom_call.1} parent=1 // pred_region
      %43 = dma.done [#allocation9], 256
    $region17: #{tpu_custom_call.1} parent=1 // pred_fallthru
      _
    %p44 = scmp.eq.s32.totalorder 0, 0
    // Predicated region
    $region18: #{tpu_custom_call.1} parent=1 // pred_check
      %p45 = pneg %p44
    $region19: #{tpu_custom_call.1} parent=1 // pred_check_branch
      %47 = sbr.rel (%p45) target = $region21
    $region20: #{tpu_custom_call.1} parent=1 // pred_region
      %48 = vst [vmem:[#allocation2] sm:$0xff] 0.0
      %49 = vst [vmem:[#allocation2 + $0x8] sm:$0xff] 0.0
      %50 = vst [vmem:[#allocation3] sm:$0xff] 0.0
      %51 = vst [vmem:[#allocation3 + $0x8] sm:$0xff] 0.0
      %52 = vst [vmem:[#allocation4] sm:$0xff] 0.0
      %53 = vst [vmem:[#allocation4 + $0x8] sm:$0xff] 0.0
    $region21: #{tpu_custom_call.1} parent=1 // pred_fallthru
      _
    %v54 = vld [vmem:[#allocation5] sm:$0xff]
    %v55 = vld [vmem:[#allocation5 + $0x8] sm:$0xff]
    %v56 = vld [vmem:[#allocation8] sm:$0xff]
    %v57 = vld [vmem:[#allocation8 + $0x8] sm:$0xff]
    %v58 = vlaneseq
    %v59 = vshrl.u32 %v58, 7
    %v60 = vadd.s32 %v59, 8
    %v61 = vlaneseq
    %v62 = vand.u32 %v61, 127
    %s63 = smul.u32 0, 16
    %v64 = vstv %s63
    %v65 = vadd.s32 %v64, %v59
    %v66 = vadd.s32 %v64, %v60
    %v67 = vmul.u32 %v65, 128
    %v68 = vmul.u32 %v66, 128
    %v69 = vadd.s32 %v67, %v62
    %v70 = vadd.s32 %v68, %v62
    %vm71 = vcmp.lt.s32.totalorder %v69, 2048
    %vm72 = vcmp.lt.s32.totalorder %v70, 2048
    %v73 = vmax.f32 %v54, 0.0
    %v74 = vmax.f32 %v55, 0.0
    %v75 = vmul.f32 %v54, %v56
    %v76 = vmul.f32 %v55, %v57
    %v77 = vsub.f32 %v73, %v75
    %v78 = vsub.f32 %v74, %v76
    %v79 = vand.u32 2147483647, %v54
    %v80 = vand.u32 2147483647, %v55
    %v81 = vsub.f32 0.0, %v79
    %v82 = vsub.f32 0.0, %v80
    %v83 = vmul.f32 %v81, 1.442695
    %v84 = vpow.pop %v83
    %v85 = vmul.f32 %v82, 1.442695
    %v86 = vpow.pop %v85
    %v87 = vadd.f32 %v84, 1.0
    %v88 = vlog2.pop %v87
    %v89 = vmul.f32 %v88, 0.6931472
    %v90 = vmul.f32 -0.5, %v84
    %v91 = vadd.f32 %v90, 1.0
    %v92 = vmul.f32 %v91, %v84
    %v93 = vand.u32 2147483647, %v84
    %vm94 = vcmp.lt.f32.partialorder %v93, 0.0004427343
    %v95 = vsel %vm94, %v92, %v89
    %v96 = vadd.f32 %v86, 1.0
    %v97 = vlog2.pop %v96
    %v98 = vmul.f32 %v97, 0.6931472
    %v99 = vmul.f32 -0.5, %v86
    %v100 = vadd.f32 %v99, 1.0
    %v101 = vmul.f32 %v100, %v86
    %v102 = vand.u32 2147483647, %v86
    %vm103 = vcmp.lt.f32.partialorder %v102, 0.0004427343
    %v104 = vsel %vm103, %v101, %v98
    %v105 = vadd.f32 %v77, %v95
    %v106 = vadd.f32 %v78, %v104
    %v107 = vsel %vm71, %v105, 0.0
    %v108 = vsel %vm72, %v106, 0.0
    %v109 = vsel %vm71, %v56, 0.0
    %v110 = vsel %vm72, %v57, 0.0
    %v111 = vld [vmem:[#allocation2] sm:$0xff]
    %v112 = vld [vmem:[#allocation2 + $0x8] sm:$0xff]
    %v113 = vadd.f32 %v111, %v107
    %v114 = vadd.f32 %v112, %v108
    %115 = vst [vmem:[#allocation2] sm:$0xff] %v113
    %116 = vst [vmem:[#allocation2 + $0x8] sm:$0xff] %v114
    %v117 = vld [vmem:[#allocation3] sm:$0xff]
    %v118 = vld [vmem:[#allocation3 + $0x8] sm:$0xff]
    %v119 = vmul.f32 %v109, %v107
    %v120 = vmul.f32 %v110, %v108
    %v121 = vadd.f32 %v117, %v119
    %v122 = vadd.f32 %v118, %v120
    %123 = vst [vmem:[#allocation3] sm:$0xff] %v121
    %124 = vst [vmem:[#allocation3 + $0x8] sm:$0xff] %v122
    %v125 = vld [vmem:[#allocation4] sm:$0xff]
    %v126 = vld [vmem:[#allocation4 + $0x8] sm:$0xff]
    %v127 = vadd.f32 %v125, %v109
    %v128 = vadd.f32 %v126, %v110
    %129 = vst [vmem:[#allocation4] sm:$0xff] %v127
    %130 = vst [vmem:[#allocation4 + $0x8] sm:$0xff] %v128
    // Predicated region
    $region22: #{tpu_custom_call.1} parent=1 // pred_check
      %p131 = pneg %p44
    $region23: #{tpu_custom_call.1} parent=1 // pred_check_branch
      %133 = sbr.rel (%p131) target = $region25
    $region24: #{tpu_custom_call.1} parent=1 // pred_region
      %v134 = vld [vmem:[#allocation2] sm:$0xff]
      %v135 = vld [vmem:[#allocation2 + $0x8] sm:$0xff]
      %v136 = vadd.f32 %v134, %v135
      %137 = vadd.xlane.f32.xlu0 %v136
      %v138 = vpop.xlane.xlu0 %137
      %v139 = vrot.slane %v138, 4
      %v140 = vadd.f32 %v138, %v139
      %v141 = vrot.slane %v140, 2
      %v142 = vadd.f32 %v140, %v141
      %v143 = vrot.slane %v142, 1
      %v144 = vadd.f32 %v142, %v143
      %s145 = vtos %v144
      %v146 = vld [vmem:[#allocation3] sm:$0xff]
      %v147 = vld [vmem:[#allocation3 + $0x8] sm:$0xff]
      %v148 = vadd.f32 %v146, %v147
      %149 = vadd.xlane.f32.xlu0 %v148
      %v150 = vpop.xlane.xlu0 %149
      %v151 = vrot.slane %v150, 4
      %v152 = vadd.f32 %v150, %v151
      %v153 = vrot.slane %v152, 2
      %v154 = vadd.f32 %v152, %v153
      %v155 = vrot.slane %v154, 1
      %v156 = vadd.f32 %v154, %v155
      %s157 = vtos %v156
      %v158 = vld [vmem:[#allocation4] sm:$0xff]
      %v159 = vld [vmem:[#allocation4 + $0x8] sm:$0xff]
      %v160 = vadd.f32 %v158, %v159
      %161 = vadd.xlane.f32.xlu0 %v160
      %v162 = vpop.xlane.xlu0 %161
      %v163 = vrot.slane %v162, 4
      %v164 = vadd.f32 %v162, %v163
      %v165 = vrot.slane %v164, 2
      %v166 = vadd.f32 %v164, %v165
      %v167 = vrot.slane %v166, 1
      %v168 = vadd.f32 %v166, %v167
      %s169 = vtos %v168
      %v170 = vrcp.pop 2048.0
      %v171 = vmul.f32 2048.0, %v170
      %v172 = vsub.f32 1.0, %v171
      %v173 = vmul.f32 %v170, %v172
      %v174 = vadd.f32 %v170, %v173
      %vm175 = vweird.f32 %v170
      %v176 = vsel %vm175, %v170, %v174
      %s177 = vtos %v176
      %s178 = smul.f32 %s145, %s177
      %v179 = vrcp.pop 2048.0
      %v180 = vmul.f32 2048.0, %v179
      %v181 = vsub.f32 1.0, %v180
      %v182 = vmul.f32 %v179, %v181
      %v183 = vadd.f32 %v179, %v182
      %vm184 = vweird.f32 %v179
      %v185 = vsel %vm184, %v179, %v183
      %s186 = vtos %v185
      %s187 = smul.f32 %s157, %s186
      %s188 = ssub.f32 2048.0, %s169
      %v189 = vstv %s169
      %v190 = vrcp.pop %v189
      %v191 = vmul.f32 %v189, %v190
      %v192 = vsub.f32 1.0, %v191
      %v193 = vmul.f32 %v190, %v192
      %v194 = vadd.f32 %v190, %v193
      %vm195 = vweird.f32 %v189
      %vm196 = vweird.f32 %v190
      %vm197 = vmor %vm195, %vm196
      %v198 = vsel %vm197, %v190, %v194
      %v199 = vand.u32 2147483647, %v189
      %vm200 = vcmp.eq.f32.partialorder %v199, 8.507059e+37
      %v201 = vand.u32 %v189, 2147483648
      %v202 = vor.u32 1.1754944e-38, %v201
      %v203 = vsel %vm200, %v202, %v198
      %s204 = vtos %v203
      %s205 = smul.f32 %s188, %s204
      %s206 = ssub.f32 %s205, 1.0
      %s207 = smul.f32 %s206, %s187
      %s208 = sadd.f32 %s178, %s207
      %s209 = scalar_lea.smem [#allocation10], 0
      %210 = sst [smem:[%s209]] %s208
    $region25: #{tpu_custom_call.1} parent=1 // pred_fallthru
      _
    // Predicated region
    $region26: #{tpu_custom_call.1} parent=1 // pred_check
      _
    $region27: #{tpu_custom_call.1} parent=1 // pred_check_branch
      %212 = sbr.rel (0) target = $region29
    $region28: #{tpu_custom_call.1} parent=1 // pred_region
      %214 = vsyncadd [#allocation7], 0
      %s216 = sshll.u32 %s2, 4
      %s217 = int_to_ptr.hbm [resolvable:$true] %s216
      %219 = dma.smem_to_hbm [#allocation10], 16, %s217, [#allocation7]
    $region29: #{tpu_custom_call.1} parent=1 // pred_fallthru
      _
    // Predicated region
    $region30: #{tpu_custom_call.1} parent=1 // pred_check
      _
    $region31: #{tpu_custom_call.1} parent=1 // pred_check_branch
      %221 = sbr.rel (0) target = $region33
    $region32: #{tpu_custom_call.1} parent=1 // pred_region
      %223 = dma.done [#allocation7], 16
    $region33: #{tpu_custom_call.1} parent=1 // pred_fallthru
      _
    %224 = sfence
    %225 = vsyncpa [#allocation6], 1
    %226 = vsyncpa [#allocation9], 1
    %227 = vsyncpa [#allocation7], 1

</llo_original>
